<compile_context>
chip_gen: v6e
topology: v6e:2x2x1
jax: 0.10.0
libtpu: 0.0.40
codegen_flags: <defaults>
</compile_context>

<pallas_src>
import numpy as np
import jax
import jax.numpy as jnp
from jax.experimental import pallas as pl
from jax.experimental.pallas import tpu as pltpu


def _round_up(n, m):
    return ((n + m - 1) // m) * m


def _softplus(y):
    # Matches torch.nn.functional.softplus (beta=1, threshold=20). The inner
    # jnp.minimum keeps the untaken exp() branch finite.
    return jnp.where(y > 20.0, y, jnp.log1p(jnp.exp(jnp.minimum(y, 20.0))))


def _argproj_kernel(x_ref, w_ref, c_ref, o_ref):
    """One row tile: y = x @ W + b, fused per-column domain_map, slim store.

    x_ref: (TILE_N, in_features)  native input dtype (cast in-kernel)
    w_ref: (in_features, Dp)      matmul dtype, resident across the grid
    c_ref: (8, Dp) f32 constants  row 0 = bias, row 1 = softplus mask,
                                  row 2 = additive offset (rows 3..7 unused)
    o_ref: (TILE_N, D)  f32       only the D real columns are written back
    """
    x = x_ref[...].astype(w_ref.dtype)      # cast fused into the kernel (VPU)
    y = jnp.dot(x, w_ref[...], preferred_element_type=jnp.float32)
    y = y + c_ref[0:1, :]                   # + bias  (sublane broadcast)
    sp = c_ref[2:3, :] + _softplus(y)       # softplus branch (with offset)
    full = jnp.where(c_ref[1:2, :] > 0.5, sp, y)
    o_ref[...] = full[:, : o_ref.shape[-1]]  # slim, D-lane store


def prepare_arg_proj(weights, biases, transforms, matmul_dtype=jnp.bfloat16):
    """Pack per-head Linear weights + domain_map constants once (hoisted out
    of the per-call path).

    weights:    list of (dim_i, in_features)  (PyTorch Linear convention)
    biases:     list of (dim_i,)
    transforms: list of (kind, offset) per head, kind in {"softplus", "id"}
    matmul_dtype: jnp.bfloat16 (default, fast) or jnp.float32 (parity with
                  the PyTorch module).
    """
    in_features = int(weights[0].shape[1])
    dims = [int(w.shape[0]) for w in weights]
    D = int(sum(dims))
    Dp = _round_up(D, 128)   # minimum lane multiple; do NOT widen to 256

    # One matmul for all heads: W_cat (in_features, D) -> pad D to Dp lanes.
    w_cat = jnp.concatenate([jnp.transpose(w) for w in weights], axis=1)
    w_p = jnp.zeros((in_features, Dp), jnp.float32)
    w_p = w_p.at[:, :D].set(w_cat.astype(jnp.float32)).astype(matmul_dtype)

    b_cat = jnp.concatenate([b.astype(jnp.float32) for b in biases], axis=0)
    mask_parts, off_parts = [], []
    for dim, (kind, off) in zip(dims, transforms):
        mask_parts.append(jnp.full((dim,), 1.0 if kind == "softplus" else 0.0,
                                   jnp.float32))
        off_parts.append(jnp.full((dim,), float(off), jnp.float32))
    mask_cat = jnp.concatenate(mask_parts, axis=0)
    off_cat = jnp.concatenate(off_parts, axis=0)

    # Single packed constant operand: row 0 bias, row 1 mask, row 2 offset.
    const_p = jnp.zeros((8, Dp), jnp.float32)
    const_p = const_p.at[0, :D].set(b_cat)
    const_p = const_p.at[1, :D].set(mask_cat)
    const_p = const_p.at[2, :D].set(off_cat)

    return {
        "w": w_p,
        "const": const_p,
        "dims": dims,
        "D": D,
        "Dp": Dp,
        "in_features": in_features,
        "matmul_dtype": matmul_dtype,
    }


def _pick_tile_n(N, in_features, D, Dp, x_bytes, w_bytes, vmem_budget,
                 max_tile):
    """Largest multiple-of-8 row tile that (a) leaves >= 2 grid steps whenever
    N > 8 (so v7x's two TensorCores both get work) and (b) fits the VMEM
    budget, counting double-buffering of ALL operands (Pallas allocates 2
    buffers per input by default, including the resident W / const)."""
    tile = min(_round_up(max_tile, 8), _round_up(max(N, 8), 8))
    if N > 8:
        tile = min(tile, _round_up(pl.cdiv(N, 2), 8))
    fixed = 2 * (in_features * Dp * w_bytes + 8 * Dp * 4)      # W + const, x2
    per_row = 2 * (in_features * x_bytes + _round_up(D, 128) * 4)  # x + out
    while tile > 8 and fixed + tile * per_row > vmem_budget:
        tile = max(8, _round_up(tile // 2, 8))
    return tile


def arg_proj_pallas(x, prepared, *, max_tile_n=2048, vmem_budget=20 << 20,
                    vmem_limit_bytes=28 << 20):
    """ArgProj forward: x (..., in_features) -> tuple of domain-mapped heads."""
    in_features = prepared["in_features"]
    dims = prepared["dims"]
    D, Dp = prepared["D"], prepared["Dp"]
    w, const = prepared["w"], prepared["const"]
    w_bytes = jnp.dtype(w.dtype).itemsize
    x_bytes = jnp.dtype(x.dtype).itemsize

    lead = x.shape[:-1]
    N = int(np.prod(lead)) if lead else 1

    # Collapse leading dims only (no copy, no host-side cast: the dtype cast
    # happens inside the kernel, so x is read from HBM exactly once).
    x2 = jnp.reshape(x, (N, in_features))

    tile_n = _pick_tile_n(N, in_features, D, Dp, x_bytes, w_bytes,
                          vmem_budget, max_tile_n)
    grid = (pl.cdiv(N, tile_n),)

    cost = pl.CostEstimate(
        flops=2 * N * in_features * Dp,
        transcendentals=N * Dp,
        bytes_accessed=(N * in_features * x_bytes          # x, read once
                        + in_features * Dp * w_bytes       # fused weight
                        + 8 * Dp * 4                       # packed constants
                        + N * D * 4),                      # slim output
    )

    out = pl.pallas_call(
        _argproj_kernel,
        out_shape=jax.ShapeDtypeStruct((N, D), jnp.float32),
        grid=grid,
        in_specs=[
            # x: streamed over rows, full in_features per block (no K pad).
            pl.BlockSpec((tile_n, in_features), lambda i: (i, 0)),
            # Fused weight: resident across the whole grid.
            pl.BlockSpec((in_features, Dp), lambda i: (0, 0)),
            # Packed bias/mask/offset constants: resident.
            pl.BlockSpec((8, Dp), lambda i: (0, 0)),
        ],
        # Slim output: last block dim == full array dim D (legal), so only the
        # real columns ever hit HBM.
        out_specs=pl.BlockSpec((tile_n, D), lambda i: (i, 0)),
        compiler_params=pltpu.CompilerParams(
            dimension_semantics=("parallel",),      # shard rows over 2 TCs
            vmem_limit_bytes=vmem_limit_bytes),     # safe on v5e/v6e/v7x
        cost_estimate=cost,
    )(x2, w, const)

    out = out.reshape(lead + (D,))

    # Split back per head (this is the tuple the PyTorch module returns).
    results, start = [], 0
    for dim in dims:
        h = out[..., start:start + dim]
        if dim == 1:
            h = jnp.squeeze(h, axis=-1)   # StudentT domain_map squeezes dim-1
        results.append(h)
        start += dim
    return tuple(results)


def _reference(x, weights, biases, transforms):
    outs = []
    for w, b, (kind, off) in zip(weights, biases, transforms):
        y = jnp.einsum("...h,dh->...d", x, w) + b
        if kind == "softplus":
            y = off + jax.nn.softplus(y)
        if y.shape[-1] == 1:
            y = jnp.squeeze(y, axis=-1)
        outs.append(y)
    return tuple(outs)


if __name__ == "__main__":
    # Small, deterministic example: StudentT output head.
    B, T, H = 2, 8, 32
    args_dim = {"df": 1, "loc": 1, "scale": 1}
    transforms = [("softplus", 2.0),   # df  = 2 + softplus(.)
                  ("id", 0.0),         # loc = identity
                  ("softplus", 0.0)]   # scale = softplus(.)

    key = jax.random.PRNGKey(0)
    kx, *kws = jax.random.split(key, 1 + 2 * len(args_dim))
    x = jax.random.normal(kx, (B, T, H), jnp.float32)

    bound = 1.0 / np.sqrt(H)  # PyTorch Linear default init range
    weights, biases = [], []
    for i, dim in enumerate(args_dim.values()):
        weights.append(jax.random.uniform(kws[2 * i], (dim, H), jnp.float32,
                                          -bound, bound))
        biases.append(jax.random.uniform(kws[2 * i + 1], (dim,), jnp.float32,
                                         -bound, bound))

    ref = _reference(x, weights, biases, transforms)

    # f32 matmul path: numerical parity with the PyTorch module.
    prep_f32 = prepare_arg_proj(weights, biases, transforms,
                                matmul_dtype=jnp.float32)
    out_f32 = jax.block_until_ready(arg_proj_pallas(x, prep_f32))
    for a, b in zip(out_f32, ref):
        np.testing.assert_allclose(np.asarray(a), np.asarray(b),
                                   rtol=1e-5, atol=1e-5)

    # Default bf16-weight path (x cast in-kernel, f32 accumulation + epilogue):
    # halves weight HBM/VMEM traffic; small numerical deviation vs f32 ref.
    prep_bf16 = prepare_arg_proj(weights, biases, transforms,
                                 matmul_dtype=jnp.bfloat16)
    out_bf16 = jax.block_until_ready(arg_proj_pallas(x, prep_bf16))
    for a, b in zip(out_bf16, ref):
        np.testing.assert_allclose(np.asarray(a), np.asarray(b),
                                   rtol=2e-2, atol=2e-2)

    print("KERNEL_OK")
</pallas_src>

<mosaic_0001>
module attributes {stable_mosaic.version = 11 : i64} {
  func.func @_argproj_kernel(%arg0: i32, %arg1: memref<8x32xf32, #tpu.memory_space<vmem>>, %arg2: memref<32x128xf32, #tpu.memory_space<vmem>>, %arg3: memref<8x128xf32, #tpu.memory_space<vmem>>, %arg4: memref<8x3xf32, #tpu.memory_space<vmem>>) attributes {dimension_semantics = [#tpu.dimension_semantics<parallel>], iteration_bounds = array<i64: 2>, scalar_prefetch = 0 : i64, scratch_operands = 0 : i64, tpu.core_type = #tpu.core_type<tc>, window_params = [{transform_indices = @transform_0, window_bounds = array<i64: 8, 32>}, {pipeline_mode = #tpu.pipeline_mode<synchronous>, transform_indices = @transform_1, window_bounds = array<i64: 32, 128>}, {pipeline_mode = #tpu.pipeline_mode<synchronous>, transform_indices = @transform_2, window_bounds = array<i64: 8, 128>}, {transform_indices = @transform_3, window_bounds = array<i64: 8, 3>}]} {
    %c0 = arith.constant 0 : index
    %c0_0 = arith.constant 0 : index
    %0 = vector.load %arg1[%c0, %c0_0] : memref<8x32xf32, #tpu.memory_space<vmem>>, vector<8x32xf32>
    %c0_1 = arith.constant 0 : index
    %c0_2 = arith.constant 0 : index
    %1 = vector.load %arg2[%c0_1, %c0_2] : memref<32x128xf32, #tpu.memory_space<vmem>>, vector<32x128xf32>
    %cst = arith.constant dense<0.000000e+00> : vector<8x128xf32>
    %2 = tpu.matmul %0, %1, %cst {dimension_numbers = #tpu.dot_dimension_numbers<[1], [0], [0], [1], [0, 0, 1, 1], [], []>} : vector<8x32xf32>, vector<32x128xf32>, vector<8x128xf32> -> vector<8x128xf32>
    %c0_3 = arith.constant 0 : index
    %c0_4 = arith.constant 0 : index
    %3 = vector.load %arg3[%c0_3, %c0_4] : memref<8x128xf32, #tpu.memory_space<vmem>>, vector<1x128xf32>
    %4 = vector.broadcast %3 : vector<1x128xf32> to vector<8x128xf32>
    %5 = arith.addf %2, %4 : vector<8x128xf32>
    %c2 = arith.constant 2 : index
    %c0_5 = arith.constant 0 : index
    %6 = vector.load %arg3[%c2, %c0_5] : memref<8x128xf32, #tpu.memory_space<vmem>>, vector<1x128xf32>
    %cst_6 = arith.constant 2.000000e+01 : f32
    %7 = vector.broadcast %cst_6 : f32 to vector<8x128xf32>
    %8 = arith.cmpf ogt, %5, %7 : vector<8x128xf32>
    %cst_7 = arith.constant 2.000000e+01 : f32
    %9 = vector.broadcast %cst_7 : f32 to vector<8x128xf32>
    %10 = arith.minimumf %5, %9 : vector<8x128xf32>
    %11 = math.exp %10 : vector<8x128xf32>
    %12 = math.log1p %11 : vector<8x128xf32>
    %13 = arith.select %8, %5, %12 : vector<8x128xi1>, vector<8x128xf32>
    %14 = vector.broadcast %6 : vector<1x128xf32> to vector<8x128xf32>
    %15 = arith.addf %14, %13 : vector<8x128xf32>
    %c1 = arith.constant 1 : index
    %c0_8 = arith.constant 0 : index
    %16 = vector.load %arg3[%c1, %c0_8] : memref<8x128xf32, #tpu.memory_space<vmem>>, vector<1x128xf32>
    %cst_9 = arith.constant 5.000000e-01 : f32
    %17 = vector.broadcast %cst_9 : f32 to vector<1x128xf32>
    %18 = arith.cmpf ogt, %16, %17 : vector<1x128xf32>
    %19 = vector.shape_cast %18 : vector<1x128xi1> to vector<1x128xi1>
    %20 = vector.broadcast %19 : vector<1x128xi1> to vector<8x128xi1>
    %21 = arith.select %20, %15, %5 : vector<8x128xi1>, vector<8x128xf32>
    %22 = vector.extract_strided_slice %21 {offsets = [0, 0], sizes = [8, 3], strides = [1, 1]} : vector<8x128xf32> to vector<8x3xf32>
    %c0_10 = arith.constant 0 : index
    %c0_11 = arith.constant 0 : index
    %23 = vector.load %arg4[%c0_10, %c0_11] : memref<8x3xf32, #tpu.memory_space<vmem>>, vector<8x3xf32>
    tpu.vector_store %arg4[%c0_10, %c0_11], %22 {strides = array<i32>} : memref<8x3xf32, #tpu.memory_space<vmem>>, vector<8x3xf32>,
    return
  }
  func.func @transform_0(%arg0: i32) -> (i32, i32) {
    %c0_i32 = arith.constant 0 : i32
    %c0_i32_0 = arith.constant 0 : i32
    return %arg0, %c0_i32 : i32, i32
  }
  func.func @transform_1(%arg0: i32) -> (i32, i32) {
    %c0_i32 = arith.constant 0 : i32
    %c0_i32_0 = arith.constant 0 : i32
    %c0_i32_1 = arith.constant 0 : i32
    return %c0_i32, %c0_i32_0 : i32, i32
  }
  func.func @transform_2(%arg0: i32) -> (i32, i32) {
    %c0_i32 = arith.constant 0 : i32
    %c0_i32_0 = arith.constant 0 : i32
    %c0_i32_1 = arith.constant 0 : i32
    return %c0_i32, %c0_i32_0 : i32, i32
  }
  func.func @transform_3(%arg0: i32) -> (i32, i32) {
    %c0_i32 = arith.constant 0 : i32
    %c0_i32_0 = arith.constant 0 : i32
    return %arg0, %c0_i32 : i32, i32
  }
}

</mosaic_0001>

<llo_original>
// kernel: tpu_custom_call.1
$region0: #{tpu_custom_call.1}
  #allocation0 [shape = 'u32[]', space=smem, size = 0x4, offset = 0x4, fixed_abs, tag = 'smem constant byte address 0x4 - core index']
  #allocation1 [shape = 'u32[144,128]{1,0:T(1,128)}', space=vmem, size = 0x12000, scoped, tag = 'internal scratch']
  %s0 = inlined_call_operand.hbm [shape: f32[16,32], index: 0, kind: input, shape index: {}]
  %s1 = inlined_call_operand.hbm [shape: f32[32,128], index: 1, kind: input, shape index: {}]
  %s2 = inlined_call_operand.hbm [shape: f32[8,128], index: 2, kind: input, shape index: {}]
  %s3 = inlined_call_operand.vmem [shape: f32[16,3], index: 3, kind: output, shape index: {}]
  %s4 = sld [smem:[#allocation0]]
  $region57: #{tpu_custom_call.1} parent=0
    _
  %s6 = ssub.s32 1, %s4
  %s7 = scalar_select 0, %s6, %s4
  $region1: #{tpu_custom_call.1} parent=0
    #allocation2 [shape = 'u8[8192]{0}', space=vmem, size = 0x2000, scoped, tag = 'input window, operand 0']
    #allocation3 [shape = 's32[2]{0}', space=sflag, size = 0x8, scoped, tag = 'scoped memory for tpu_custom_call.1']
    #allocation4 [shape = 'u8[16384]{0}', space=vmem, size = 0x4000, scoped, tag = 'input window, operand 1, single buffered']
    #allocation5 [shape = 's32[1]{0}', space=sflag, size = 0x4, scoped, tag = 'scoped memory for tpu_custom_call.1']
    #allocation6 [shape = 'u8[4096]{0}', space=vmem, size = 0x1000, scoped, tag = 'input window, operand 2, single buffered']
    %8 = vsyncpa [#allocation3], 0
    %s9 = scalar_lea.sflag [#allocation3], 1
    %10 = vsyncpa %s9, 0
    %11 = vsyncpa [#allocation5], 0
    loop: start=0, step=1, limit=4
    $region2: #{tpu_custom_call.1} parent=1 // loop_pre_header
      _
    $region3: #{tpu_custom_call.1} parent=1 // loop_header
      %s13 = sphi 0, %s17
      %p14 = scmp.ge.s32.totalorder %s13, 4
      %s23 = sphi 0, %s25
      %s26 = sphi 0, %s23
      %s27 = sphi 0, %s26
      %s43 = sphi 0, %s27
      %s47 = sphi 0, %s47
      %s49 = sphi 0, %s47
      %s50 = sphi 0, %s49
      %s64 = sphi 0, %s50
      %s68 = sphi 0, %s68
      %s70 = sphi 0, %s68
      %s71 = sphi 0, %s70
      %s85 = sphi 0, %s71
      %s91 = sphi 0, %s93
      %s94 = sphi 0, %s91
      %s95 = sphi 0, %s94
      %s111 = sphi 0, %s95
    $region4: #{tpu_custom_call.1} parent=1 // loop_header_branch
      %16 = sbr.rel (%p14) target = $region8
    $region5: #{tpu_custom_call.1} parent=1 // loop_body
      %s18 = ssub.s32 %s13, 1
      %s19 = ssub.s32 %s13, 2
      %s20 = sadd.s32 %s13, 1
      %s21 = ssub.s32 %s13, %s20
      %p22 = scmp.eq.s32.totalorder %s21, 0
      %s24 = sadd.s32 %s23, 1
      %s25 = scalar_select %p22, %s23, %s24
      %p28 = pneg %p22
      %p29 = scmp.eq.s32.totalorder %s13, 1
      %p30 = por %p28, %p29
      %p31 = scmp.ne.s32.totalorder %s23, %s26
      %p32 = scmp.eq.s32.totalorder %s13, 0
      %p33 = por %p31, %p32
      %p34 = scmp.ne.s32.totalorder %s23, %s26
      %p35 = scmp.eq.s32.totalorder %s18, 1
      %p36 = por %p34, %p35
      %p37 = scmp.ne.s32.totalorder %s26, %s27
      %p38 = scmp.eq.s32.totalorder %s18, 0
      %p39 = por %p37, %p38
      %p40 = scmp.ne.s32.totalorder %s26, %s27
      %p41 = scmp.eq.s32.totalorder %s19, 1
      %p42 = por %p40, %p41
      %p44 = scmp.ne.s32.totalorder %s27, %s43
      %p45 = scmp.eq.s32.totalorder %s19, 0
      %p46 = por %p44, %p45
      %s48 = sadd.s32 %s47, 1
      %p51 = scmp.eq.s32.totalorder %s13, 1
      %p52 = scmp.ne.s32.totalorder %s47, %s49
      %p53 = scmp.eq.s32.totalorder %s13, 0
      %p54 = por %p52, %p53
      %p55 = scmp.ne.s32.totalorder %s47, %s49
      %p56 = scmp.eq.s32.totalorder %s18, 1
      %p57 = por %p55, %p56
      %p58 = scmp.ne.s32.totalorder %s49, %s50
      %p59 = scmp.eq.s32.totalorder %s18, 0
      %p60 = por %p58, %p59
      %p61 = scmp.ne.s32.totalorder %s49, %s50
      %p62 = scmp.eq.s32.totalorder %s19, 1
      %p63 = por %p61, %p62
      %p65 = scmp.ne.s32.totalorder %s50, %s64
      %p66 = scmp.eq.s32.totalorder %s19, 0
      %p67 = por %p65, %p66
      %s69 = sadd.s32 %s68, 1
      %p72 = scmp.eq.s32.totalorder %s13, 1
      %p73 = scmp.ne.s32.totalorder %s68, %s70
      %p74 = scmp.eq.s32.totalorder %s13, 0
      %p75 = por %p73, %p74
      %p76 = scmp.ne.s32.totalorder %s68, %s70
      %p77 = scmp.eq.s32.totalorder %s18, 1
      %p78 = por %p76, %p77
      %p79 = scmp.ne.s32.totalorder %s70, %s71
      %p80 = scmp.eq.s32.totalorder %s18, 0
      %p81 = por %p79, %p80
      %p82 = scmp.ne.s32.totalorder %s70, %s71
      %p83 = scmp.eq.s32.totalorder %s19, 1
      %p84 = por %p82, %p83
      %p86 = scmp.ne.s32.totalorder %s71, %s85
      %p87 = scmp.eq.s32.totalorder %s19, 0
      %p88 = por %p86, %p87
      %s89 = ssub.s32 %s13, %s20
      %p90 = scmp.eq.s32.totalorder %s89, 0
      %s92 = sadd.s32 %s91, 1
      %s93 = scalar_select %p90, %s91, %s92
      %p96 = pneg %p90
      %p97 = scmp.eq.s32.totalorder %s13, 1
      %p98 = por %p96, %p97
      %p99 = scmp.ne.s32.totalorder %s91, %s94
      %p100 = scmp.eq.s32.totalorder %s13, 0
      %p101 = por %p99, %p100
      %p102 = scmp.ne.s32.totalorder %s91, %s94
      %p103 = scmp.eq.s32.totalorder %s18, 1
      %p104 = por %p102, %p103
      %p105 = scmp.ne.s32.totalorder %s94, %s95
      %p106 = scmp.eq.s32.totalorder %s18, 0
      %p107 = por %p105, %p106
      %p108 = scmp.ne.s32.totalorder %s94, %s95
      %p109 = scmp.eq.s32.totalorder %s19, 1
      %p110 = por %p108, %p109
      %p112 = scmp.ne.s32.totalorder %s95, %s111
      %p113 = scmp.eq.s32.totalorder %s19, 0
      %p114 = por %p112, %p113
      %p115 = scmp.le.s32.totalorder 1, %s13
      %p116 = scmp.lt.s32.totalorder %s13, 3
      %p117 = pnand %p115, %p116
      %p118 = pneg %p117
      // Predicated region
      $region9: #{tpu_custom_call.1} parent=5 // pred_check
        _
      $region10: #{tpu_custom_call.1} parent=5 // pred_check_branch
        %120 = sbr.rel (%p117) target = $region12
      $region11: #{tpu_custom_call.1} parent=5 // pred_region
        %s121 = ssub.s32 %s13, 1
        // Predicated region
        $region13: #{tpu_custom_call.1} parent=11 // pred_check
          %p122 = pneg %p60
        $region14: #{tpu_custom_call.1} parent=11 // pred_check_branch
          %124 = sbr.rel (%p122) target = $region16
        $region15: #{tpu_custom_call.1} parent=11 // pred_region
          %s126 = ssub.s32 512, 512
          %127 = vsyncadd [#allocation5], %s126
          %s128 = sshll.u32 [#allocation4], 4
          %s129 = int_to_ptr.vmem [resolvable:$true] %s128
          %134 = dma.hbm_to_vmem [thread:$0]  %s1, 512, %s129, [#allocation5], 128, 128, 8
        $region16: #{tpu_custom_call.1} parent=11 // pred_fallthru
          _
        // Predicated region
        $region17: #{tpu_custom_call.1} parent=11 // pred_check
          %p135 = pneg %p81
        $region18: #{tpu_custom_call.1} parent=11 // pred_check_branch
          %137 = sbr.rel (%p135) target = $region20
        $region19: #{tpu_custom_call.1} parent=11 // pred_region
          %s139 = ssub.s32 128, 128
          %140 = vsyncadd [#allocation5], %s139
          %s142 = sshll.u32 [#allocation6], 4
          %s143 = int_to_ptr.vmem [resolvable:$true] %s142
          %145 = dma.hbm_to_vmem [thread:$0]  %s2, 128, %s143, [#allocation5]
        $region20: #{tpu_custom_call.1} parent=11 // pred_fallthru
          _
      $region12: #{tpu_custom_call.1} parent=5 // pred_fallthru
        _
      %p146 = scmp.lt.s32.totalorder %s13, 2
      // Predicated region
      $region21: #{tpu_custom_call.1} parent=5 // pred_check
        %p147 = pneg %p146
      $region22: #{tpu_custom_call.1} parent=5 // pred_check_branch
        %149 = sbr.rel (%p147) target = $region24
      $region23: #{tpu_custom_call.1} parent=5 // pred_region
        // Predicated region
        $region25: #{tpu_custom_call.1} parent=23 // pred_check
          %p150 = pneg %p33
        $region26: #{tpu_custom_call.1} parent=23 // pred_check_branch
          %152 = sbr.rel (%p150) target = $region28
        $region27: #{tpu_custom_call.1} parent=23 // pred_region
          %s153 = sand.u32 %s23, 1
          %s154 = scalar_lea.sflag [#allocation3], %s153
          %s155 = sand.u32 %s23, 1
          %s156 = smul.addr %s155, 8
          %s157 = scalar_lea.vmem [#allocation2], %s156
          %s159 = ssub.s32 128, 128
          %160 = vsyncadd %s154, %s159
          %s161 = smul.addr %s13, 128
          %s162 = scalar_lea.hbm %s0, %s161
          %s164 = sshll.u32 %s157, 4
          %s165 = int_to_ptr.vmem [resolvable:$true] %s164
          %167 = dma.hbm_to_vmem [thread:$0]  %s162, 128, %s165, %s154
        $region28: #{tpu_custom_call.1} parent=23 // pred_fallthru
          _
      $region24: #{tpu_custom_call.1} parent=5 // pred_fallthru
        _
      %p168 = scmp.le.s32.totalorder 1, %s13
      %p169 = scmp.lt.s32.totalorder %s13, 3
      %p170 = pnand %p168, %p169
      %p171 = pneg %p170
      // Predicated region
      $region29: #{tpu_custom_call.1} parent=5 // pred_check
        _
      $region30: #{tpu_custom_call.1} parent=5 // pred_check_branch
        %173 = sbr.rel (%p170) target = $region32
      $region31: #{tpu_custom_call.1} parent=5 // pred_region
        %s174 = ssub.s32 %s13, 1
        %s175 = sand.u32 %s26, 1
        %s176 = scalar_lea.sflag [#allocation3], %s175
        %s177 = sand.u32 %s26, 1
        %s178 = smul.addr %s177, 8
        %s179 = scalar_lea.vmem [#allocation2], %s178
        // Predicated region
        $region33: #{tpu_custom_call.1} parent=31 // pred_check
          %p180 = pneg %p39
        $region34: #{tpu_custom_call.1} parent=31 // pred_check_branch
          %182 = sbr.rel (%p180) target = $region36
        $region35: #{tpu_custom_call.1} parent=31 // pred_region
          %183 = dma.done %s176, 128
        $region36: #{tpu_custom_call.1} parent=31 // pred_fallthru
          _
        // Predicated region
        $region37: #{tpu_custom_call.1} parent=31 // pred_check
          %p184 = pneg %p60
        $region38: #{tpu_custom_call.1} parent=31 // pred_check_branch
          %186 = sbr.rel (%p184) target = $region40
        $region39: #{tpu_custom_call.1} parent=31 // pred_region
          %187 = dma.done [#allocation5], 512
        $region40: #{tpu_custom_call.1} parent=31 // pred_fallthru
          _
        // Predicated region
        $region41: #{tpu_custom_call.1} parent=31 // pred_check
          %p188 = pneg %p81
        $region42: #{tpu_custom_call.1} parent=31 // pred_check_branch
          %190 = sbr.rel (%p188) target = $region44
        $region43: #{tpu_custom_call.1} parent=31 // pred_region
          %191 = dma.done [#allocation5], 128
        $region44: #{tpu_custom_call.1} parent=31 // pred_fallthru
          _
        %s192 = sand.u32 %s26, 1
        %s193 = scalar_lea.sflag [#allocation3], %s192
        %s194 = sand.u32 %s26, 1
        %s195 = smul.addr %s194, 8
        %s196 = scalar_lea.vmem [#allocation2], %s195
        %p197 = pneg %p39
        %p198 = pneg %p36
        %p199 = pneg %p60
        %p200 = pneg %p57
        %p201 = pneg %p81
        %p202 = pneg %p78
        %p203 = pneg %p107
        %p204 = pneg %p104
        %p205 = scmp.lt.s32.totalorder %s18, 1
        %s206 = scalar_select %p205, %s18, 1
        %s207 = smul.addr %s206, 8
        %s208 = scalar_lea.vmem %s3, %s207
        %p209 = scmp.lt.s32.totalorder %s18, 1
        %s210 = scalar_select %p209, %s18, 1
        %s211 = smul.addr %s210, 8
        %s212 = scalar_lea.vmem %s3, %s211
        %v213 = vld [vmem:[%s179] sm:$0xff]
        %v214 = vld [vmem:[#allocation4] sm:$0xff]
        %v215 = vld [vmem:[#allocation4 + $0x8] sm:$0xff]
        %v216 = vld [vmem:[#allocation4 + $0x10] sm:$0xff]
        %v217 = vld [vmem:[#allocation4 + $0x18] sm:$0xff]
        %v218 = vld [vmem:[#allocation6] sm:$0x1]
        %v219 = vlaneseq
        %v220 = vshrl.u32 %v219, 7
        %v221 = vsub.s32 0, %v220
        %v222 = vrot.slane %v218, %v221
        %vm223 = vcmask 261120
        %v225 = vsel %vm223, %v213, 0
        %227 = vmatprep.subr.mxu0 0.0
        %228 = vmatpush1.msra.mxu0 0.0
        %229 = vmatprep.subr.mxu0 0.0
        %230 = vmatpush1.msra.mxu0 0.0
        %231 = vmatprep.subr.mxu0 0.0
        %232 = vmatpush1.msra.mxu0 0.0
        %233 = vmatprep.subr.mxu0 0.0
        %234 = vmatpush1.msra.mxu0 0.0
        %235 = vmatprep.subr.mxu0 0.0
        %236 = vmatpush1.msra.mxu0 0.0
        %237 = vmatprep.subr.mxu0 0.0
        %238 = vmatpush1.msra.mxu0 0.0
        %239 = vmatprep.subr.mxu0 0.0
        %240 = vmatpush1.msra.mxu0 0.0
        %241 = vmatprep.subr.mxu0 0.0
        %242 = vmatpush1.msra.mxu0 0.0
        %243 = vmatprep.subr.mxu0 0.0
        %244 = vmatpush1.msra.mxu0 0.0
        %245 = vmatprep.subr.mxu0 0.0
        %246 = vmatpush1.msra.mxu0 0.0
        %247 = vmatprep.subr.mxu0 0.0
        %248 = vmatpush1.msra.mxu0 0.0
        %249 = vmatprep.subr.mxu0 0.0
        %250 = vmatpush1.msra.mxu0 0.0
        %251 = vmatprep.subr.mxu0 0.0
        %252 = vmatpush1.msra.mxu0 %v217
        %253 = vmatprep.subr.mxu0 0.0
        %254 = vmatpush1.msra.mxu0 %v216
        %255 = vmatprep.subr.mxu0 0.0
        %256 = vmatpush1.msra.mxu0 %v215
        %257 = vmatprep.subr.mxu0 0.0
        %258 = vmatpush1.msra.mxu0 %v214
        %259 = vmatprep.subr.mxu0 0.0
        %260 = vmatpush2.msra.mxu0 0.0
        %261 = vmatprep.subr.mxu0 0.0
        %262 = vmatpush2.msra.mxu0 0.0
        %263 = vmatprep.subr.mxu0 0.0
        %264 = vmatpush2.msra.mxu0 0.0
        %265 = vmatprep.subr.mxu0 0.0
        %266 = vmatpush2.msra.mxu0 0.0
        %267 = vmatprep.subr.mxu0 0.0
        %268 = vmatpush2.msra.mxu0 0.0
        %269 = vmatprep.subr.mxu0 0.0
        %270 = vmatpush2.msra.mxu0 0.0
        %271 = vmatprep.subr.mxu0 0.0
        %272 = vmatpush2.msra.mxu0 0.0
        %273 = vmatprep.subr.mxu0 0.0
        %274 = vmatpush2.msra.mxu0 0.0
        %275 = vmatprep.subr.mxu0 0.0
        %276 = vmatpush2.msra.mxu0 0.0
        %277 = vmatprep.subr.mxu0 0.0
        %278 = vmatpush2.msra.mxu0 0.0
        %279 = vmatprep.subr.mxu0 0.0
        %280 = vmatpush2.msra.mxu0 0.0
        %281 = vmatprep.subr.mxu0 0.0
        %282 = vmatpush2.msra.mxu0 0.0
        %283 = vmatprep.subr.mxu0 0.0
        %284 = vmatpush2.msra.mxu0 0.0
        %285 = vmatprep.subr.mxu0 0.0
        %286 = vmatpush2.msra.mxu0 0.0
        %287 = vmatprep.subr.mxu0 0.0
        %288 = vmatpush2.msra.mxu0 0.0
        %289 = vmatprep.subr.mxu0 0.0
        %290 = vmatpush2.msra.mxu0 0.0
        %291 = vmatprep.mubr.f32.mxu0 0.0
        %292 = vmatmul.mubr.f32.gmra.mxu0 %v225
        %v293 = vpop.f32.mrf.mxu0
        %v294 = vadd.f32 %v222, %v293
        %v295 = vpop.f32.mrf.mxu0
        %296 = vdwg.mxu0
        %v297 = vld [vmem:[#allocation6 + $0x2] sm:$0x1]
        %vm298 = vcmp.gt.f32.partialorder %v294, 20.0
        %v299 = vmin.f32 %v294, 20.0
        %v300 = vmul.f32 %v299, 1.442695
        %v301 = vpow.pop %v300
        %v302 = vadd.f32 %v301, 1.0
        %v303 = vlog2.pop %v302
        %v304 = vmul.f32 %v303, 0.6931472
        %v305 = vmul.f32 -0.5, %v301
        %v306 = vadd.f32 %v305, 1.0
        %v307 = vmul.f32 %v306, %v301
        %v308 = vand.u32 2147483647, %v301
        %vm309 = vcmp.lt.f32.partialorder %v308, 0.0004427343
        %v310 = vsel %vm309, %v307, %v304
        %v311 = vsel %vm298, %v294, %v310
        %v312 = vlaneseq
        %v313 = vshrl.u32 %v312, 7
        %v314 = vsub.s32 0, %v313
        %v315 = vrot.slane %v297, %v314
        %v316 = vadd.f32 %v315, %v311
        %v317 = vld [vmem:[#allocation6 + $0x1] sm:$0x1]
        %vm318 = vcmp.gt.f32.partialorder %v317, 0.5
        %v319 = vsel %vm318, 1, 0
        %v320 = vlaneseq
        %v321 = vshrl.u32 %v320, 7
        %v322 = vsub.s32 0, %v321
        %v323 = vrot.slane %v319, %v322
        %vm324 = vcmp.eq.s32.totalorder %v323, 1
        %v325 = vsel %vm324, %v316, %v294
        %vm326 = vcmask 23552
        %327 = vst.msk [vmem:[%s212] sm:$0xff] %vm326, %v325
        %p328 = scmp.lt.s32.totalorder %s18, 1
        %s329 = scalar_select %p328, %s18, 1
        %s330 = smul.addr %s329, 8
        %s331 = scalar_lea.vmem %s3, %s330
        // Predicated region
        $region45: #{tpu_custom_call.1} parent=31 // pred_check
          %p332 = pneg %p104
        $region46: #{tpu_custom_call.1} parent=31 // pred_check_branch
          %334 = sbr.rel (%p332) target = $region48
        $region47: #{tpu_custom_call.1} parent=31 // pred_region
          _
        $region48: #{tpu_custom_call.1} parent=31 // pred_fallthru
          _
      $region32: #{tpu_custom_call.1} parent=5 // pred_fallthru
        _
      %p335 = scmp.le.s32.totalorder 2, %s13
      // Predicated region
      $region49: #{tpu_custom_call.1} parent=5 // pred_check
        %p336 = pneg %p335
      $region50: #{tpu_custom_call.1} parent=5 // pred_check_branch
        %338 = sbr.rel (%p336) target = $region52
      $region51: #{tpu_custom_call.1} parent=5 // pred_region
        %s339 = ssub.s32 %s13, 2
        // Predicated region
        $region53: #{tpu_custom_call.1} parent=51 // pred_check
          %p340 = pneg %p110
        $region54: #{tpu_custom_call.1} parent=51 // pred_check_branch
          %342 = sbr.rel (%p340) target = $region56
        $region55: #{tpu_custom_call.1} parent=51 // pred_region
          %p343 = scmp.lt.s32.totalorder %s19, 1
          %s344 = scalar_select %p343, %s19, 1
          %s345 = smul.addr %s344, 8
          %s346 = scalar_lea.vmem %s3, %s345
        $region56: #{tpu_custom_call.1} parent=51 // pred_fallthru
          _
      $region52: #{tpu_custom_call.1} parent=5 // pred_fallthru
        _
    $region6: #{tpu_custom_call.1} parent=1 // loop_footer
      %s17 = sadd.s32 1, %s13
    $region7: #{tpu_custom_call.1} parent=1 // loop_footer_branch
      %12 = sbr.rel target = $region3
    $region8: #{tpu_custom_call.1} parent=1 // loop_exit
      _
    %347 = vsyncpa [#allocation3], 1
    %s348 = scalar_lea.sflag [#allocation3], 1
    %349 = vsyncpa %s348, 1
    %350 = vsyncpa [#allocation5], 1

</llo_original>
